<compile_context>
chip_gen: v6e
topology: v6e:2x2x1
jax: 0.10.0
libtpu: 0.0.40
codegen_flags: <defaults>
</compile_context>

<pallas_src>
import jax
import jax.numpy as jnp
from jax import lax
from jax.experimental import pallas as pl
from jax.experimental.pallas import tpu as pltpu

HIDDEN = 128   # lane-dense stand-in for hidden_size=512 (multiple of 128)
VOCAB = 64     # small stand-in for input_size
SEQ = 8        # time steps processed per forward call
BATCH = 16     # independent sequences per step (bf16 sublane packing = 16)

# Whole-array-in-VMEM spec (single kernel invocation, no grid).
_VMEM = pl.BlockSpec(memory_space=pltpu.MemorySpace.VMEM)


def input_gates_kernel(x_ref, w_ih_ref, b_x_ref, gx_ref):
    """Input-side GRU gates for ALL steps: one (T*B, H)@(H, 3H) MXU matmul."""
    gx_ref[...] = (
        jnp.dot(x_ref[...], w_ih_ref[...], preferred_element_type=jnp.float32)
        + b_x_ref[...])


def gru_recurrence_kernel(gx_ref, w_hh_ref, b_hn_ref, h0_ref, out_ref):
    """Serial GRU recurrence over T steps inside one kernel invocation.

    gx_ref : (T, B, 3H) f32  precomputed input gates, columns [r | z | n]
    w_hh   : (H, 3H)    bf16 hidden-side weights, columns [r | z | n]
    b_hn   : (1, H)     f32  hidden bias of the n gate (multiplied by r)
    h0     : (B, H)     f32  initial hidden state
    out    : (T, B, H)  f32  per-step GRU outputs (h_t)
    """
    T = gx_ref.shape[0]
    H = h0_ref.shape[-1]
    w_hh = w_hh_ref[...]            # loaded once, resident for all steps
    b_hn = b_hn_ref[...]

    def step(t, h):
        gx = gx_ref[t]                                              # (B, 3H)
        gh = jnp.dot(h.astype(jnp.bfloat16), w_hh,
                     preferred_element_type=jnp.float32)            # (B, 3H)
        rz = jax.nn.sigmoid(gx[:, :2 * H] + gh[:, :2 * H])
        r, z = rz[:, :H], rz[:, H:]
        n = jnp.tanh(gx[:, 2 * H:] + r * (gh[:, 2 * H:] + b_hn))
        h_new = (1.0 - z) * n + z * h
        out_ref[t] = h_new.astype(out_ref.dtype)
        return h_new

    lax.fori_loop(0, T, step, h0_ref[...], unroll=True)


def _fold_biases(params):
    H = HIDDEN
    b_ih, b_hh = params["b_ih"], params["b_hh"]
    # r/z biases fold together; n-gate input bias rides along in b_x; n-gate
    # hidden bias stays separate (it is multiplied by r) — torch GRU math.
    b_x = jnp.concatenate([b_ih[:2 * H] + b_hh[:2 * H],
                           b_ih[2 * H:]]).reshape(1, 3 * H)
    b_hn = b_hh[2 * H:].reshape(1, H)
    return b_x, b_hn


def encoder_rnn_forward(tokens, hidden0, params):
    """EncoderRNN forward on (T, B) token sequences.

    Per-step math matches the PyTorch module (eval-mode dropout); T = B = 1
    reduces to the original single-token call.  Returns (output, hidden) =
    ((T, B, H) per-step outputs, (1, B, H) final hidden state).
    """
    T, B = tokens.shape
    H = HIDDEN
    b_x, b_hn = _fold_biases(params)

    # Embedding lookup (eval-mode dropout == identity) as a plain XLA gather.
    x = params["embedding"][tokens]                     # (T, B, H) bf16

    # Input-side gates for every step, off the serial critical path.
    gx_flat = pl.pallas_call(
        input_gates_kernel,
        out_shape=jax.ShapeDtypeStruct((T * B, 3 * H), jnp.float32),
        in_specs=[_VMEM, _VMEM, _VMEM],
        out_specs=_VMEM,
    )(x.reshape(T * B, H), params["w_ih"], b_x)
    gx = gx_flat.reshape(T, B, 3 * H)

    h0 = hidden0.reshape(B, H).astype(jnp.float32)

    # Single-invocation serial recurrence (weights resident, in-kernel loop).
    out_seq = pl.pallas_call(
        gru_recurrence_kernel,
        out_shape=jax.ShapeDtypeStruct((T, B, H), jnp.float32),
        in_specs=[_VMEM, _VMEM, _VMEM, _VMEM],
        out_specs=_VMEM,
    )(gx, params["w_hh"], b_hn, h0)

    output = out_seq                # (T, B, H): GRU output at every step
    hidden = out_seq[-1:]           # (1, B, H): final hidden state
    return output, hidden


def init_params(key):
    k_emb, k_wih, k_whh, k_bih, k_bhh = jax.random.split(key, 5)
    bound = 1.0 / jnp.sqrt(jnp.float32(HIDDEN))
    return {
        # nn.Embedding(input_size, hidden_size): N(0,1); stored (V, H) bf16.
        "embedding": jax.random.normal(
            k_emb, (VOCAB, HIDDEN), jnp.float32).astype(jnp.bfloat16),
        # nn.GRU weights, pre-transposed and gate-fused: columns [r | z | n].
        "w_ih": jax.random.uniform(k_wih, (HIDDEN, 3 * HIDDEN), jnp.float32,
                                   -bound, bound).astype(jnp.bfloat16),
        "w_hh": jax.random.uniform(k_whh, (HIDDEN, 3 * HIDDEN), jnp.float32,
                                   -bound, bound).astype(jnp.bfloat16),
        # Raw biases in torch layout [b_r, b_z, b_n], kept f32.
        "b_ih": jax.random.uniform(k_bih, (3 * HIDDEN,), jnp.float32,
                                   -bound, bound),
        "b_hh": jax.random.uniform(k_bhh, (3 * HIDDEN,), jnp.float32,
                                   -bound, bound),
    }


def reference_forward(tokens, hidden0, params):
    """Pure-JAX reference of the same batched multi-step GRU (same precision)."""
    T, B = tokens.shape
    H = HIDDEN
    emb = params["embedding"]                         # (V, H) bf16
    w_ih, w_hh = params["w_ih"], params["w_hh"]
    b_x, b_hn = _fold_biases(params)
    h = hidden0.reshape(B, H).astype(jnp.float32)
    outs = []
    for t in range(T):
        xt = emb[tokens[t]]                           # (B, H) bf16
        gx = jnp.dot(xt, w_ih, preferred_element_type=jnp.float32) + b_x
        gh = jnp.dot(h.astype(jnp.bfloat16), w_hh,
                     preferred_element_type=jnp.float32)
        rz = jax.nn.sigmoid(gx[:, :2 * H] + gh[:, :2 * H])
        r, z = rz[:, :H], rz[:, H:]
        n = jnp.tanh(gx[:, 2 * H:] + r * (gh[:, 2 * H:] + b_hn))
        h = (1.0 - z) * n + z * h
        outs.append(h)
    return jnp.stack(outs, axis=0), h[None]


if __name__ == "__main__":
    key = jax.random.PRNGKey(0)
    params = init_params(key)

    tokens = jax.random.randint(jax.random.fold_in(key, 7), (SEQ, BATCH),
                                0, VOCAB, dtype=jnp.int32)
    hidden0 = jnp.zeros((1, BATCH, HIDDEN), jnp.float32)   # EncoderRNN.initHidden

    output, hidden = encoder_rnn_forward(tokens, hidden0, params)
    jax.block_until_ready((output, hidden))

    ref_out, ref_hid = reference_forward(tokens, hidden0, params)
    assert output.shape == (SEQ, BATCH, HIDDEN)
    assert hidden.shape == (1, BATCH, HIDDEN)
    assert jnp.allclose(output, ref_out, atol=1e-3, rtol=1e-3), "output mismatch"
    assert jnp.allclose(hidden, ref_hid, atol=1e-3, rtol=1e-3), "hidden mismatch"

    print("KERNEL_OK")
</pallas_src>

<mosaic_0001>
module attributes {stable_mosaic.version = 11 : i64} {
  func.func @input_gates_kernel(%arg0: memref<128x128xbf16, #tpu.memory_space<vmem>>, %arg1: memref<128x384xbf16, #tpu.memory_space<vmem>>, %arg2: memref<1x384xf32, #tpu.memory_space<vmem>>, %arg3: memref<128x384xf32, #tpu.memory_space<vmem>>) attributes {dimension_semantics = [], scalar_prefetch = 0 : i64, scratch_operands = 0 : i64, tpu.core_type = #tpu.core_type<tc>} {
    %c0 = arith.constant 0 : index
    %c0_0 = arith.constant 0 : index
    %0 = vector.load %arg0[%c0, %c0_0] : memref<128x128xbf16, #tpu.memory_space<vmem>>, vector<128x128xbf16>
    %c0_1 = arith.constant 0 : index
    %c0_2 = arith.constant 0 : index
    %1 = vector.load %arg1[%c0_1, %c0_2] : memref<128x384xbf16, #tpu.memory_space<vmem>>, vector<128x384xbf16>
    %cst = arith.constant dense<0.000000e+00> : vector<128x384xf32>
    %2 = tpu.matmul %0, %1, %cst {dimension_numbers = #tpu.dot_dimension_numbers<[1], [0], [0], [1], [0, 0, 1, 1], [], []>} : vector<128x128xbf16>, vector<128x384xbf16>, vector<128x384xf32> -> vector<128x384xf32>
    %c0_3 = arith.constant 0 : index
    %c0_4 = arith.constant 0 : index
    %3 = vector.load %arg2[%c0_3, %c0_4] : memref<1x384xf32, #tpu.memory_space<vmem>>, vector<1x384xf32>
    %4 = vector.broadcast %3 : vector<1x384xf32> to vector<128x384xf32>
    %5 = arith.addf %2, %4 : vector<128x384xf32>
    %c0_5 = arith.constant 0 : index
    %c0_6 = arith.constant 0 : index
    %6 = vector.load %arg3[%c0_5, %c0_6] : memref<128x384xf32, #tpu.memory_space<vmem>>, vector<128x384xf32>
    tpu.vector_store %arg3[%c0_5, %c0_6], %5 {strides = array<i32>} : memref<128x384xf32, #tpu.memory_space<vmem>>, vector<128x384xf32>,
    return
  }
}

</mosaic_0001>

<llo_original>
// kernel: tpu_custom_call.1
$region0: #{tpu_custom_call.1}
  #allocation0 [shape = 'u32[]', space=smem, size = 0x4, offset = 0x4, fixed_abs, tag = 'smem constant byte address 0x4 - core index']
  #allocation1 [shape = 'u32[144,128]{1,0:T(1,128)}', space=vmem, size = 0x12000, scoped, tag = 'internal scratch']
  %s0 = inlined_call_operand.hbm [shape: bf16[128,128], index: 0, kind: input, shape index: {}]
  %s1 = inlined_call_operand.hbm [shape: bf16[128,384], index: 1, kind: input, shape index: {}]
  %s2 = inlined_call_operand.vmem [shape: f32[1,384], index: 2, kind: input, shape index: {}]
  %s3 = inlined_call_operand.hbm [shape: f32[128,384], index: 3, kind: output, shape index: {}]
  %s4 = sld [smem:[#allocation0]]
  $region30: #{tpu_custom_call.1} parent=0
    _
  %s6 = ssub.s32 1, %s4
  %s7 = scalar_select 0, %s6, %s4
  $region1: #{tpu_custom_call.1} parent=0
    #allocation2 [shape = 'u8[32768]{0}', space=vmem, size = 0x8000, scoped, tag = 'input window, operand 0, single buffered']
    #allocation3 [shape = 's32[1]{0}', space=sflag, size = 0x4, scoped, tag = 'scoped memory for tpu_custom_call.1']
    #allocation4 [shape = 's32[1]{0}', space=sflag, size = 0x4, scoped, tag = 'scoped memory for tpu_custom_call.1']
    #allocation5 [shape = 'u8[98304]{0}', space=vmem, size = 0x18000, scoped, tag = 'input window, operand 1, single buffered']
    #allocation6 [shape = 's32[1]{0}', space=sflag, size = 0x4, scoped, tag = 'scoped memory for tpu_custom_call.1']
    #allocation7 [shape = 'u8[196608]{0}', space=vmem, size = 0x30000, scoped, tag = 'output window, operand 0, single buffered']
    %8 = vsyncpa [#allocation3], 0
    %9 = vsyncpa [#allocation6], 0
    %10 = vsyncpa [#allocation4], 0
    // Predicated region
    $region2: #{tpu_custom_call.1} parent=1 // pred_check
      _
    $region3: #{tpu_custom_call.1} parent=1 // pred_check_branch
      %12 = sbr.rel (0) target = $region5
    $region4: #{tpu_custom_call.1} parent=1 // pred_region
      %s14 = ssub.s32 1024, 1024
      %15 = vsyncadd [#allocation3], %s14
      %s16 = sshll.u32 [#allocation2], 4
      %s17 = int_to_ptr.vmem [resolvable:$true] %s16
      %22 = dma.hbm_to_vmem [thread:$0]  %s0, 1024, %s17, [#allocation3], 64, 64, 4
    $region5: #{tpu_custom_call.1} parent=1 // pred_fallthru
      _
    // Predicated region
    $region6: #{tpu_custom_call.1} parent=1 // pred_check
      _
    $region7: #{tpu_custom_call.1} parent=1 // pred_check_branch
      %24 = sbr.rel (0) target = $region9
    $region8: #{tpu_custom_call.1} parent=1 // pred_region
      %s26 = ssub.s32 3072, 3072
      %27 = vsyncadd [#allocation6], %s26
      %s28 = sshll.u32 [#allocation5], 4
      %s29 = int_to_ptr.vmem [resolvable:$true] %s28
      %34 = dma.hbm_to_vmem [thread:$0]  %s1, 3072, %s29, [#allocation6], 192, 192, 12
    $region9: #{tpu_custom_call.1} parent=1 // pred_fallthru
      _
    // Predicated region
    $region10: #{tpu_custom_call.1} parent=1 // pred_check
      _
    $region11: #{tpu_custom_call.1} parent=1 // pred_check_branch
      %36 = sbr.rel (0) target = $region13
    $region12: #{tpu_custom_call.1} parent=1 // pred_region
      _
    $region13: #{tpu_custom_call.1} parent=1 // pred_fallthru
      _
    // Predicated region
    $region14: #{tpu_custom_call.1} parent=1 // pred_check
      _
    $region15: #{tpu_custom_call.1} parent=1 // pred_check_branch
      %38 = sbr.rel (0) target = $region17
    $region16: #{tpu_custom_call.1} parent=1 // pred_region
      %39 = dma.done [#allocation3], 1024
    $region17: #{tpu_custom_call.1} parent=1 // pred_fallthru
      _
    // Predicated region
    $region18: #{tpu_custom_call.1} parent=1 // pred_check
      _
    $region19: #{tpu_custom_call.1} parent=1 // pred_check_branch
      %41 = sbr.rel (0) target = $region21
    $region20: #{tpu_custom_call.1} parent=1 // pred_region
      %42 = dma.done [#allocation6], 3072
    $region21: #{tpu_custom_call.1} parent=1 // pred_fallthru
      _
    %v44 = vld [vmem:[#allocation2] sm:$0xf]
    %v45 = vld [vmem:[#allocation2 + $0x4] sm:$0xf]
    %v46 = vld [vmem:[#allocation2 + $0x8] sm:$0xf]
    %v47 = vld [vmem:[#allocation2 + $0xc] sm:$0xf]
    %v48 = vld [vmem:[#allocation2 + $0x10] sm:$0xf]
    %v49 = vld [vmem:[#allocation2 + $0x14] sm:$0xf]
    %v50 = vld [vmem:[#allocation2 + $0x18] sm:$0xf]
    %v51 = vld [vmem:[#allocation2 + $0x1c] sm:$0xf]
    %v52 = vld [vmem:[#allocation2 + $0x20] sm:$0xf]
    %v53 = vld [vmem:[#allocation2 + $0x24] sm:$0xf]
    %v54 = vld [vmem:[#allocation2 + $0x28] sm:$0xf]
    %v55 = vld [vmem:[#allocation2 + $0x2c] sm:$0xf]
    %v56 = vld [vmem:[#allocation2 + $0x30] sm:$0xf]
    %v57 = vld [vmem:[#allocation2 + $0x34] sm:$0xf]
    %v58 = vld [vmem:[#allocation2 + $0x38] sm:$0xf]
    %v59 = vld [vmem:[#allocation2 + $0x3c] sm:$0xf]
    %v60 = vld [vmem:[#allocation5] sm:$0xff]
    %v61 = vld [vmem:[#allocation5 + $0x8] sm:$0xf]
    %v62 = vld [vmem:[#allocation5 + $0xc] sm:$0xff]
    %v63 = vld [vmem:[#allocation5 + $0x14] sm:$0xf]
    %v64 = vld [vmem:[#allocation5 + $0x18] sm:$0xff]
    %v65 = vld [vmem:[#allocation5 + $0x20] sm:$0xf]
    %v66 = vld [vmem:[#allocation5 + $0x24] sm:$0xff]
    %v67 = vld [vmem:[#allocation5 + $0x2c] sm:$0xf]
    %v68 = vld [vmem:[#allocation5 + $0x30] sm:$0xff]
    %v69 = vld [vmem:[#allocation5 + $0x38] sm:$0xf]
    %v70 = vld [vmem:[#allocation5 + $0x3c] sm:$0xff]
    %v71 = vld [vmem:[#allocation5 + $0x44] sm:$0xf]
    %v72 = vld [vmem:[#allocation5 + $0x48] sm:$0xff]
    %v73 = vld [vmem:[#allocation5 + $0x50] sm:$0xf]
    %v74 = vld [vmem:[#allocation5 + $0x54] sm:$0xff]
    %v75 = vld [vmem:[#allocation5 + $0x5c] sm:$0xf]
    %v76 = vld [vmem:[#allocation5 + $0x60] sm:$0xff]
    %v77 = vld [vmem:[#allocation5 + $0x68] sm:$0xf]
    %v78 = vld [vmem:[#allocation5 + $0x6c] sm:$0xff]
    %v79 = vld [vmem:[#allocation5 + $0x74] sm:$0xf]
    %v80 = vld [vmem:[#allocation5 + $0x78] sm:$0xff]
    %v81 = vld [vmem:[#allocation5 + $0x80] sm:$0xf]
    %v82 = vld [vmem:[#allocation5 + $0x84] sm:$0xff]
    %v83 = vld [vmem:[#allocation5 + $0x8c] sm:$0xf]
    %v84 = vld [vmem:[#allocation5 + $0x90] sm:$0xff]
    %v85 = vld [vmem:[#allocation5 + $0x98] sm:$0xf]
    %v86 = vld [vmem:[#allocation5 + $0x9c] sm:$0xff]
    %v87 = vld [vmem:[#allocation5 + $0xa4] sm:$0xf]
    %v88 = vld [vmem:[#allocation5 + $0xa8] sm:$0xff]
    %v89 = vld [vmem:[#allocation5 + $0xb0] sm:$0xf]
    %v90 = vld [vmem:[#allocation5 + $0xb4] sm:$0xff]
    %v91 = vld [vmem:[#allocation5 + $0xbc] sm:$0xf]
    %v92 = vld [vmem:[%s2] sm:$0x7]
    %v94 = vlaneseq
    %v95 = vshrl.u32 %v94, 7
    %v96 = vsub.s32 0, %v95
    %v97 = vrot.slane %v92, %v96
    %v98 = vlaneseq
    %v99 = vshrl.u32 %v98, 7
    %v100 = vsub.s32 1, %v99
    %v101 = vrot.slane %v92, %v100
    %v102 = vlaneseq
    %v103 = vshrl.u32 %v102, 7
    %v104 = vsub.s32 2, %v103
    %v105 = vrot.slane %v92, %v104
    %v125 = vunpack.c.l.b16 %v44
    %v126 = vunpack.c.l.b16 %v45
    %v127 = vunpack.c.l.b16 %v46
    %v128 = vunpack.c.l.b16 %v47
    %v129 = vunpack.c.l.b16 %v48
    %v130 = vunpack.c.l.b16 %v49
    %v131 = vunpack.c.l.b16 %v50
    %v132 = vunpack.c.l.b16 %v51
    %v133 = vunpack.c.l.b16 %v52
    %v134 = vunpack.c.l.b16 %v53
    %v135 = vunpack.c.l.b16 %v54
    %v136 = vunpack.c.l.b16 %v55
    %v137 = vunpack.c.l.b16 %v56
    %v138 = vunpack.c.l.b16 %v57
    %v139 = vunpack.c.l.b16 %v58
    %v140 = vunpack.c.l.b16 %v59
    %v141 = vpack.c.b16 %v126, %v125
    %v142 = vpack.c.b16 %v128, %v127
    %v143 = vpack.c.b16 %v130, %v129
    %v144 = vpack.c.b16 %v132, %v131
    %v145 = vpack.c.b16 %v134, %v133
    %v146 = vpack.c.b16 %v136, %v135
    %v147 = vpack.c.b16 %v138, %v137
    %v148 = vpack.c.b16 %v140, %v139
    %v189 = vunpack.c.l.b16 %v60
    %v190 = vunpack.c.h.b16 %v60
    %v191 = vunpack.c.l.b16 %v61
    %v192 = vunpack.c.l.b16 %v62
    %v193 = vunpack.c.h.b16 %v62
    %v194 = vunpack.c.l.b16 %v63
    %v195 = vunpack.c.l.b16 %v64
    %v196 = vunpack.c.h.b16 %v64
    %v197 = vunpack.c.l.b16 %v65
    %v198 = vunpack.c.l.b16 %v66
    %v199 = vunpack.c.h.b16 %v66
    %v200 = vunpack.c.l.b16 %v67
    %v201 = vunpack.c.l.b16 %v68
    %v202 = vunpack.c.h.b16 %v68
    %v203 = vunpack.c.l.b16 %v69
    %v204 = vunpack.c.l.b16 %v70
    %v205 = vunpack.c.h.b16 %v70
    %v206 = vunpack.c.l.b16 %v71
    %v207 = vunpack.c.l.b16 %v72
    %v208 = vunpack.c.h.b16 %v72
    %v209 = vunpack.c.l.b16 %v73
    %v210 = vunpack.c.l.b16 %v74
    %v211 = vunpack.c.h.b16 %v74
    %v212 = vunpack.c.l.b16 %v75
    %v213 = vunpack.c.l.b16 %v76
    %v214 = vunpack.c.h.b16 %v76
    %v215 = vunpack.c.l.b16 %v77
    %v216 = vunpack.c.l.b16 %v78
    %v217 = vunpack.c.h.b16 %v78
    %v218 = vunpack.c.l.b16 %v79
    %v219 = vunpack.c.l.b16 %v80
    %v220 = vunpack.c.h.b16 %v80
    %v221 = vunpack.c.l.b16 %v81
    %v222 = vunpack.c.l.b16 %v82
    %v223 = vunpack.c.h.b16 %v82
    %v224 = vunpack.c.l.b16 %v83
    %v225 = vunpack.c.l.b16 %v84
    %v226 = vunpack.c.h.b16 %v84
    %v227 = vunpack.c.l.b16 %v85
    %v228 = vunpack.c.l.b16 %v86
    %v229 = vunpack.c.h.b16 %v86
    %v230 = vunpack.c.l.b16 %v87
    %v231 = vunpack.c.l.b16 %v88
    %v232 = vunpack.c.h.b16 %v88
    %v233 = vunpack.c.l.b16 %v89
    %v234 = vunpack.c.l.b16 %v90
    %v235 = vunpack.c.h.b16 %v90
    %v236 = vunpack.c.l.b16 %v91
    %v237 = vpack.c.b16 %v192, %v189
    %v238 = vpack.c.b16 %v193, %v190
    %v239 = vpack.c.b16 %v194, %v191
    %v240 = vpack.c.b16 %v198, %v195
    %v241 = vpack.c.b16 %v199, %v196
    %v242 = vpack.c.b16 %v200, %v197
    %v243 = vpack.c.b16 %v204, %v201
    %v244 = vpack.c.b16 %v205, %v202
    %v245 = vpack.c.b16 %v206, %v203
    %v246 = vpack.c.b16 %v210, %v207
    %v247 = vpack.c.b16 %v211, %v208
    %v248 = vpack.c.b16 %v212, %v209
    %v249 = vpack.c.b16 %v216, %v213
    %v250 = vpack.c.b16 %v217, %v214
    %v251 = vpack.c.b16 %v218, %v215
    %v252 = vpack.c.b16 %v222, %v219
    %v253 = vpack.c.b16 %v223, %v220
    %v254 = vpack.c.b16 %v224, %v221
    %v255 = vpack.c.b16 %v228, %v225
    %v256 = vpack.c.b16 %v229, %v226
    %v257 = vpack.c.b16 %v230, %v227
    %v258 = vpack.c.b16 %v234, %v231
    %v259 = vpack.c.b16 %v235, %v232
    %v260 = vpack.c.b16 %v236, %v233
    %285 = vmatprep.subr.bf16.mxu0 %v259
    %286 = vmatpush1.bf16.msra.mxu0 %v258
    %287 = vmatprep.subr.bf16.mxu0 %v256
    %288 = vmatpush1.bf16.msra.mxu0 %v255
    %289 = vmatprep.subr.bf16.mxu0 %v253
    %290 = vmatpush1.bf16.msra.mxu0 %v252
    %291 = vmatprep.subr.bf16.mxu0 %v250
    %292 = vmatpush1.bf16.msra.mxu0 %v249
    %293 = vmatprep.subr.bf16.mxu0 %v247
    %294 = vmatpush1.bf16.msra.mxu0 %v246
    %295 = vmatprep.subr.bf16.mxu0 %v244
    %296 = vmatpush1.bf16.msra.mxu0 %v243
    %297 = vmatprep.subr.bf16.mxu0 %v241
    %298 = vmatpush1.bf16.msra.mxu0 %v240
    %299 = vmatprep.subr.bf16.mxu0 %v238
    %300 = vmatpush1.bf16.msra.mxu0 %v237
    %301 = vmatprep.subr.bf16.mxu0 0
    %302 = vmatpush2.bf16.msra.mxu0 0
    %303 = vmatprep.subr.bf16.mxu0 0
    %304 = vmatpush2.bf16.msra.mxu0 0
    %305 = vmatprep.subr.bf16.mxu0 0
    %306 = vmatpush2.bf16.msra.mxu0 0
    %307 = vmatprep.subr.bf16.mxu0 0
    %308 = vmatpush2.bf16.msra.mxu0 0
    %309 = vmatprep.subr.bf16.mxu0 0
    %310 = vmatpush2.bf16.msra.mxu0 0
    %311 = vmatprep.subr.bf16.mxu0 0
    %312 = vmatpush2.bf16.msra.mxu0 0
    %313 = vmatprep.subr.bf16.mxu0 0
    %314 = vmatpush2.bf16.msra.mxu0 0
    %315 = vmatprep.subr.bf16.mxu0 0
    %316 = vmatpush2.bf16.msra.mxu0 0
    %317 = vmatprep.mubr.bf16.mxu0 0
    %318 = vmatmul.mubr.bf16.gmra.mxu0 %v141
    %v319 = vpop.f32.mrf.mxu0
    %v320 = vadd.f32 %v97, %v319
    %v321 = vpop.f32.mrf.mxu0
    %v322 = vadd.f32 %v101, %v321
    %v323 = vpop.f32.mrf.mxu0
    %v324 = vadd.f32 %v97, %v323
    %v325 = vpop.f32.mrf.mxu0
    %v326 = vadd.f32 %v101, %v325
    %327 = vmatprep.mubr.bf16.mxu0 0
    %328 = vmatmul.mubr.bf16.gmra.mxu0 %v142
    %v329 = vpop.f32.mrf.mxu0
    %v330 = vadd.f32 %v97, %v329
    %v331 = vpop.f32.mrf.mxu0
    %v332 = vadd.f32 %v101, %v331
    %v333 = vpop.f32.mrf.mxu0
    %v334 = vadd.f32 %v97, %v333
    %v335 = vpop.f32.mrf.mxu0
    %v336 = vadd.f32 %v101, %v335
    %337 = vmatprep.mubr.bf16.mxu0 0
    %338 = vmatmul.mubr.bf16.gmra.mxu0 %v143
    %v339 = vpop.f32.mrf.mxu0
    %v340 = vadd.f32 %v97, %v339
    %v341 = vpop.f32.mrf.mxu0
    %v342 = vadd.f32 %v101, %v341
    %v343 = vpop.f32.mrf.mxu0
    %v344 = vadd.f32 %v97, %v343
    %v345 = vpop.f32.mrf.mxu0
    %v346 = vadd.f32 %v101, %v345
    %347 = vmatprep.mubr.bf16.mxu0 0
    %348 = vmatmul.mubr.bf16.gmra.mxu0 %v144
    %v349 = vpop.f32.mrf.mxu0
    %v350 = vadd.f32 %v97, %v349
    %v351 = vpop.f32.mrf.mxu0
    %v352 = vadd.f32 %v101, %v351
    %v353 = vpop.f32.mrf.mxu0
    %v354 = vadd.f32 %v97, %v353
    %v355 = vpop.f32.mrf.mxu0
    %v356 = vadd.f32 %v101, %v355
    %357 = vmatprep.mubr.bf16.mxu0 0
    %358 = vmatmul.mubr.bf16.gmra.mxu0 %v145
    %v359 = vpop.f32.mrf.mxu0
    %v360 = vadd.f32 %v97, %v359
    %v361 = vpop.f32.mrf.mxu0
    %v362 = vadd.f32 %v101, %v361
    %v363 = vpop.f32.mrf.mxu0
    %v364 = vadd.f32 %v97, %v363
    %v365 = vpop.f32.mrf.mxu0
    %v366 = vadd.f32 %v101, %v365
    %367 = vmatprep.mubr.bf16.mxu0 0
    %368 = vmatmul.mubr.bf16.gmra.mxu0 %v146
    %v369 = vpop.f32.mrf.mxu0
    %v370 = vadd.f32 %v97, %v369
    %v371 = vpop.f32.mrf.mxu0
    %v372 = vadd.f32 %v101, %v371
    %v373 = vpop.f32.mrf.mxu0
    %v374 = vadd.f32 %v97, %v373
    %v375 = vpop.f32.mrf.mxu0
    %v376 = vadd.f32 %v101, %v375
    %377 = vmatprep.mubr.bf16.mxu0 0
    %378 = vmatmul.mubr.bf16.gmra.mxu0 %v147
    %v379 = vpop.f32.mrf.mxu0
    %v380 = vadd.f32 %v97, %v379
    %v381 = vpop.f32.mrf.mxu0
    %v382 = vadd.f32 %v101, %v381
    %v383 = vpop.f32.mrf.mxu0
    %v384 = vadd.f32 %v97, %v383
    %v385 = vpop.f32.mrf.mxu0
    %v386 = vadd.f32 %v101, %v385
    %387 = vmatprep.mubr.bf16.mxu0 0
    %388 = vmatmul.mubr.bf16.gmra.mxu0 %v148
    %v389 = vpop.f32.mrf.mxu0
    %v390 = vadd.f32 %v97, %v389
    %v391 = vpop.f32.mrf.mxu0
    %v392 = vadd.f32 %v101, %v391
    %v393 = vpop.f32.mrf.mxu0
    %v394 = vadd.f32 %v97, %v393
    %v395 = vpop.f32.mrf.mxu0
    %v396 = vadd.f32 %v101, %v395
    %397 = vdwg.mxu0
    %398 = vmatprep.subr.bf16.mxu0 0
    %399 = vmatpush1.bf16.msra.mxu0 %v260
    %400 = vmatprep.subr.bf16.mxu0 0
    %401 = vmatpush1.bf16.msra.mxu0 %v257
    %402 = vmatprep.subr.bf16.mxu0 0
    %403 = vmatpush1.bf16.msra.mxu0 %v254
    %404 = vmatprep.subr.bf16.mxu0 0
    %405 = vmatpush1.bf16.msra.mxu0 %v251
    %406 = vmatprep.subr.bf16.mxu0 0
    %407 = vmatpush1.bf16.msra.mxu0 %v248
    %408 = vmatprep.subr.bf16.mxu0 0
    %409 = vmatpush1.bf16.msra.mxu0 %v245
    %410 = vmatprep.subr.bf16.mxu0 0
    %411 = vmatpush1.bf16.msra.mxu0 %v242
    %412 = vmatprep.subr.bf16.mxu0 0
    %413 = vmatpush1.bf16.msra.mxu0 %v239
    %414 = vmatprep.subr.bf16.mxu0 0
    %415 = vmatpush2.bf16.msra.mxu0 0
    %416 = vmatprep.subr.bf16.mxu0 0
    %417 = vmatpush2.bf16.msra.mxu0 0
    %418 = vmatprep.subr.bf16.mxu0 0
    %419 = vmatpush2.bf16.msra.mxu0 0
    %420 = vmatprep.subr.bf16.mxu0 0
    %421 = vmatpush2.bf16.msra.mxu0 0
    %422 = vmatprep.subr.bf16.mxu0 0
    %423 = vmatpush2.bf16.msra.mxu0 0
    %424 = vmatprep.subr.bf16.mxu0 0
    %425 = vmatpush2.bf16.msra.mxu0 0
    %426 = vmatprep.subr.bf16.mxu0 0
    %427 = vmatpush2.bf16.msra.mxu0 0
    %428 = vmatprep.subr.bf16.mxu0 0
    %429 = vmatpush2.bf16.msra.mxu0 0
    %430 = vmatprep.mubr.bf16.mxu0 0
    %431 = vmatmul.mubr.bf16.gmra.mxu0 %v141
    %v432 = vpop.f32.mrf.mxu0
    %v433 = vadd.f32 %v105, %v432
    %v434 = vpop.f32.mrf.mxu0
    %v435 = vpop.f32.mrf.mxu0
    %v436 = vadd.f32 %v105, %v435
    %v437 = vpop.f32.mrf.mxu0
    %438 = vmatprep.mubr.bf16.mxu0 0
    %439 = vmatmul.mubr.bf16.gmra.mxu0 %v142
    %v440 = vpop.f32.mrf.mxu0
    %v441 = vadd.f32 %v105, %v440
    %v442 = vpop.f32.mrf.mxu0
    %v443 = vpop.f32.mrf.mxu0
    %v444 = vadd.f32 %v105, %v443
    %v445 = vpop.f32.mrf.mxu0
    %446 = vmatprep.mubr.bf16.mxu0 0
    %447 = vmatmul.mubr.bf16.gmra.mxu0 %v143
    %v448 = vpop.f32.mrf.mxu0
    %v449 = vadd.f32 %v105, %v448
    %v450 = vpop.f32.mrf.mxu0
    %v451 = vpop.f32.mrf.mxu0
    %v452 = vadd.f32 %v105, %v451
    %v453 = vpop.f32.mrf.mxu0
    %454 = vmatprep.mubr.bf16.mxu0 0
    %455 = vmatmul.mubr.bf16.gmra.mxu0 %v144
    %v456 = vpop.f32.mrf.mxu0
    %v457 = vadd.f32 %v105, %v456
    %v458 = vpop.f32.mrf.mxu0
    %v459 = vpop.f32.mrf.mxu0
    %v460 = vadd.f32 %v105, %v459
    %v461 = vpop.f32.mrf.mxu0
    %462 = vmatprep.mubr.bf16.mxu0 0
    %463 = vmatmul.mubr.bf16.gmra.mxu0 %v145
    %v464 = vpop.f32.mrf.mxu0
    %v465 = vadd.f32 %v105, %v464
    %v466 = vpop.f32.mrf.mxu0
    %v467 = vpop.f32.mrf.mxu0
    %v468 = vadd.f32 %v105, %v467
    %v469 = vpop.f32.mrf.mxu0
    %470 = vmatprep.mubr.bf16.mxu0 0
    %471 = vmatmul.mubr.bf16.gmra.mxu0 %v146
    %v472 = vpop.f32.mrf.mxu0
    %v473 = vadd.f32 %v105, %v472
    %v474 = vpop.f32.mrf.mxu0
    %v475 = vpop.f32.mrf.mxu0
    %v476 = vadd.f32 %v105, %v475
    %v477 = vpop.f32.mrf.mxu0
    %478 = vmatprep.mubr.bf16.mxu0 0
    %479 = vmatmul.mubr.bf16.gmra.mxu0 %v147
    %v480 = vpop.f32.mrf.mxu0
    %v481 = vadd.f32 %v105, %v480
    %v482 = vpop.f32.mrf.mxu0
    %v483 = vpop.f32.mrf.mxu0
    %v484 = vadd.f32 %v105, %v483
    %v485 = vpop.f32.mrf.mxu0
    %486 = vmatprep.mubr.bf16.mxu0 0
    %487 = vmatmul.mubr.bf16.gmra.mxu0 %v148
    %v488 = vpop.f32.mrf.mxu0
    %v489 = vadd.f32 %v105, %v488
    %v490 = vpop.f32.mrf.mxu0
    %v491 = vpop.f32.mrf.mxu0
    %v492 = vadd.f32 %v105, %v491
    %v493 = vpop.f32.mrf.mxu0
    %494 = vdwg.mxu0
    %495 = vst [vmem:[#allocation7] sm:$0xff] %v320
    %496 = vst [vmem:[#allocation7 + $0x8] sm:$0xff] %v322
    %497 = vst [vmem:[#allocation7 + $0x10] sm:$0xff] %v433
    %498 = vst [vmem:[#allocation7 + $0x18] sm:$0xff] %v324
    %499 = vst [vmem:[#allocation7 + $0x20] sm:$0xff] %v326
    %500 = vst [vmem:[#allocation7 + $0x28] sm:$0xff] %v436
    %501 = vst [vmem:[#allocation7 + $0x30] sm:$0xff] %v330
    %502 = vst [vmem:[#allocation7 + $0x38] sm:$0xff] %v332
    %503 = vst [vmem:[#allocation7 + $0x40] sm:$0xff] %v441
    %504 = vst [vmem:[#allocation7 + $0x48] sm:$0xff] %v334
    %505 = vst [vmem:[#allocation7 + $0x50] sm:$0xff] %v336
    %506 = vst [vmem:[#allocation7 + $0x58] sm:$0xff] %v444
    %507 = vst [vmem:[#allocation7 + $0x60] sm:$0xff] %v340
    %508 = vst [vmem:[#allocation7 + $0x68] sm:$0xff] %v342
    %509 = vst [vmem:[#allocation7 + $0x70] sm:$0xff] %v449
    %510 = vst [vmem:[#allocation7 + $0x78] sm:$0xff] %v344
    %511 = vst [vmem:[#allocation7 + $0x80] sm:$0xff] %v346
    %512 = vst [vmem:[#allocation7 + $0x88] sm:$0xff] %v452
    %513 = vst [vmem:[#allocation7 + $0x90] sm:$0xff] %v350
    %514 = vst [vmem:[#allocation7 + $0x98] sm:$0xff] %v352
    %515 = vst [vmem:[#allocation7 + $0xa0] sm:$0xff] %v457
    %516 = vst [vmem:[#allocation7 + $0xa8] sm:$0xff] %v354
    %517 = vst [vmem:[#allocation7 + $0xb0] sm:$0xff] %v356
    %518 = vst [vmem:[#allocation7 + $0xb8] sm:$0xff] %v460
    %519 = vst [vmem:[#allocation7 + $0xc0] sm:$0xff] %v360
    %520 = vst [vmem:[#allocation7 + $0xc8] sm:$0xff] %v362
    %521 = vst [vmem:[#allocation7 + $0xd0] sm:$0xff] %v465
    %522 = vst [vmem:[#allocation7 + $0xd8] sm:$0xff] %v364
    %523 = vst [vmem:[#allocation7 + $0xe0] sm:$0xff] %v366
    %524 = vst [vmem:[#allocation7 + $0xe8] sm:$0xff] %v468
    %525 = vst [vmem:[#allocation7 + $0xf0] sm:$0xff] %v370
    %526 = vst [vmem:[#allocation7 + $0xf8] sm:$0xff] %v372
    %527 = vst [vmem:[#allocation7 + $0x100] sm:$0xff] %v473
    %528 = vst [vmem:[#allocation7 + $0x108] sm:$0xff] %v374
    %529 = vst [vmem:[#allocation7 + $0x110] sm:$0xff] %v376
    %530 = vst [vmem:[#allocation7 + $0x118] sm:$0xff] %v476
    %531 = vst [vmem:[#allocation7 + $0x120] sm:$0xff] %v380
    %532 = vst [vmem:[#allocation7 + $0x128] sm:$0xff] %v382
    %533 = vst [vmem:[#allocation7 + $0x130] sm:$0xff] %v481
    %534 = vst [vmem:[#allocation7 + $0x138] sm:$0xff] %v384
    %535 = vst [vmem:[#allocation7 + $0x140] sm:$0xff] %v386
    %536 = vst [vmem:[#allocation7 + $0x148] sm:$0xff] %v484
    %537 = vst [vmem:[#allocation7 + $0x150] sm:$0xff] %v390
    %538 = vst [vmem:[#allocation7 + $0x158] sm:$0xff] %v392
    %539 = vst [vmem:[#allocation7 + $0x160] sm:$0xff] %v489
    %540 = vst [vmem:[#allocation7 + $0x168] sm:$0xff] %v394
    %541 = vst [vmem:[#allocation7 + $0x170] sm:$0xff] %v396
    %542 = vst [vmem:[#allocation7 + $0x178] sm:$0xff] %v492
    // Predicated region
    $region22: #{tpu_custom_call.1} parent=1 // pred_check
      _
    $region23: #{tpu_custom_call.1} parent=1 // pred_check_branch
      %544 = sbr.rel (0) target = $region25
    $region24: #{tpu_custom_call.1} parent=1 // pred_region
      %s546 = ssub.s32 6144, 6144
      %547 = vsyncadd [#allocation4], %s546
      %s548 = sshll.u32 [#allocation7], 4
      %s549 = int_to_ptr.vmem [resolvable:$true] %s548
      %554 = dma.vmem_to_hbm [thread:$0]  %s549, 6144, %s3, [#allocation4], 384, 384, 24
    $region25: #{tpu_custom_call.1} parent=1 // pred_fallthru
      _
    // Predicated region
    $region26: #{tpu_custom_call.1} parent=1 // pred_check
      _
    $region27: #{tpu_custom_call.1} parent=1 // pred_check_branch
      %556 = sbr.rel (0) target = $region29
    $region28: #{tpu_custom_call.1} parent=1 // pred_region
      %557 = dma.done [#allocation4], 6144
    $region29: #{tpu_custom_call.1} parent=1 // pred_fallthru
      _
    %558 = vsyncpa [#allocation3], 1
    %559 = vsyncpa [#allocation6], 1
    %560 = vsyncpa [#allocation4], 1

</llo_original>
